<compile_context>
chip_gen: v7x
topology: tpu7x:2x2x1
jax: 0.10.0
libtpu: 0.0.40
codegen_flags: <defaults>
</compile_context>

<pallas_src>
import jax
import jax.numpy as jnp
from jax.experimental import pallas as pl
from jax.experimental.pallas import tpu as pltpu


# ----------------------------- kernels -------------------------------------


def _pair_kernel(x_ref, y_ref, z_ref, w1_ref, b1_ref, w2_ref, b2_ref, o_ref):
    TB, D = x_ref.shape
    H = w1_ref.shape[1]

    # Layer 1 on the MXU.  Static ref slices of W1 are free.
    w1_top = w1_ref[pl.ds(0, D), :]
    w1_bot = w1_ref[pl.ds(D, D), :]

    # Shared partial product x @ W1[:D] (reused by both branches).
    xA = jnp.dot(x_ref[...], w1_top, preferred_element_type=jnp.float32)  # (TB,H)

    # Fuse the y/z bottom-half matmuls into one stacked (2*TB, D) MXU pass.
    yz = jnp.concatenate([y_ref[...], z_ref[...]], axis=0)                # (2TB,D) bf16
    yzB = jnp.dot(yz, w1_bot, preferred_element_type=jnp.float32)         # (2TB,H) f32

    b1 = b1_ref[...]                                                      # (1,H) f32
    h = jnp.maximum(
        yzB.reshape(2, TB, H) + xA[None, :, :] + b1[None, :, :], 0.0
    )                                                                     # (2,TB,H) f32

    # Layer 2: (H -> 1) projection as VPU multiply + lane reduce on the
    # stacked tensor.  b2 is a scalar in SMEM.
    w2 = w2_ref[...]                                                      # (1,H) f32
    b2 = b2_ref[0, 0]
    o_ref[...] = jnp.sum(h * w2[None, :, :], axis=-1) + b2                # (2,TB)


def _single_kernel(x_ref, y_ref, w1_ref, b1_ref, w2_ref, b2_ref, o_ref):
    # z=None path: only one branch -> no wasted MXU/VPU work or HBM stream.
    TB, D = x_ref.shape
    xA = jnp.dot(x_ref[...], w1_ref[pl.ds(0, D), :],
                 preferred_element_type=jnp.float32)
    yB = jnp.dot(y_ref[...], w1_ref[pl.ds(D, D), :],
                 preferred_element_type=jnp.float32)
    h = jnp.maximum(xA + yB + b1_ref[...], 0.0)                           # (TB,H) f32
    d = jnp.sum(h * w2_ref[...], axis=-1) + b2_ref[0, 0]                  # (TB,)
    o_ref[...] = d[None, :]                                               # (1,TB)


# ----------------------------- wrappers ------------------------------------


def _pick_tile(B):
    # Sub-batch tiles must be lane-aligned (multiple of 128) because the
    # (n_rows, B) output slab is lane-dense along batch, and sublane-aligned
    # for the (TB, D) input blocks.  Otherwise fall back to one full tile.
    for tb in (512, 384, 256, 128):
        if tb < B and B % tb == 0:
            return tb
    return B


def _vmem_limit_bytes(TB, D, H):
    # Double-buffered activation tiles (bf16) + resident weights + out tile,
    # plus kernel temporaries (yz concat, stacked h), with generous headroom.
    per_step = (3 * 2 * TB * D * 2          # x/y/z tiles, 2 buffers, bf16
                + 2 * D * H * 2             # resident W1 (bf16)
                + 2 * H * 4 + 4             # b1 + W2 rows (f32) + b2
                + 2 * 2 * TB * 4)           # out tile, 2 buffers, f32
    scratch = 2 * TB * D * 2 + 2 * 2 * TB * H * 4
    # Keep well under v7x's 64 MiB physical VMEM; floor at 8 MiB.
    return int(min(max(4 * (per_step + scratch), 8 << 20), 48 << 20))


def _common_specs(D, H, TB):
    act_spec = pl.BlockSpec((TB, D), lambda i: (i, 0))
    w1_spec = pl.BlockSpec((2 * D, H), lambda i: (0, 0))     # resident
    row_spec = pl.BlockSpec((1, H), lambda i: (0, 0))        # resident
    smem_spec = pl.BlockSpec(memory_space=pltpu.MemorySpace.SMEM)
    return act_spec, w1_spec, row_spec, smem_spec


def _prep_params(w1, b1, w2, b2):
    H = w1.shape[1]
    return (w1.astype(jnp.bfloat16),                       # MXU operand dtype
            b1.reshape(1, H).astype(jnp.float32),
            w2.reshape(1, H).astype(jnp.float32),           # (H,1) col -> (1,H) row
            b2.reshape(1, 1).astype(jnp.float32))


def _pair_apply(x, y, z, w1, b1, w2, b2):
    """Returns [net(cat(x,y)); net(cat(x,z))] as a lane-dense (2, B) array."""
    B, D = x.shape
    H = w1.shape[1]
    TB = _pick_tile(B)
    nb = B // TB

    w1b, b1_2d, w2_row, b2_2d = _prep_params(w1, b1, w2, b2)
    act_spec, w1_spec, row_spec, smem_spec = _common_specs(D, H, TB)

    flops = 2 * 3 * B * D * H + 2 * 2 * B * H
    bytes_accessed = 3 * B * D * 2 + 2 * D * H * 2 + 2 * H * 4 + 4 + 2 * B * 4

    return pl.pallas_call(
        _pair_kernel,
        out_shape=jax.ShapeDtypeStruct((2, B), jnp.float32),
        grid=(nb,),
        in_specs=[act_spec, act_spec, act_spec, w1_spec, row_spec, row_spec,
                  smem_spec],
        out_specs=pl.BlockSpec((2, TB), lambda i: (0, i)),
        compiler_params=pltpu.CompilerParams(
            dimension_semantics=("parallel",),
            vmem_limit_bytes=_vmem_limit_bytes(TB, D, H)),
        cost_estimate=pl.CostEstimate(flops=flops, transcendentals=0,
                                      bytes_accessed=bytes_accessed),
    )(x.astype(jnp.bfloat16), y.astype(jnp.bfloat16), z.astype(jnp.bfloat16),
      w1b, b1_2d, w2_row, b2_2d)


def _single_apply(x, y, w1, b1, w2, b2):
    """Returns net(cat(x,y)) as a lane-dense (1, B) array."""
    B, D = x.shape
    H = w1.shape[1]
    TB = _pick_tile(B)
    nb = B // TB

    w1b, b1_2d, w2_row, b2_2d = _prep_params(w1, b1, w2, b2)
    act_spec, w1_spec, row_spec, smem_spec = _common_specs(D, H, TB)

    flops = 2 * 2 * B * D * H + 2 * B * H
    bytes_accessed = 2 * B * D * 2 + 2 * D * H * 2 + 2 * H * 4 + 4 + B * 4

    return pl.pallas_call(
        _single_kernel,
        out_shape=jax.ShapeDtypeStruct((1, B), jnp.float32),
        grid=(nb,),
        in_specs=[act_spec, act_spec, w1_spec, row_spec, row_spec, smem_spec],
        out_specs=pl.BlockSpec((1, TB), lambda i: (0, i)),
        compiler_params=pltpu.CompilerParams(
            dimension_semantics=("parallel",),
            vmem_limit_bytes=_vmem_limit_bytes(TB, D, H)),
        cost_estimate=pl.CostEstimate(flops=flops, transcendentals=0,
                                      bytes_accessed=bytes_accessed),
    )(x.astype(jnp.bfloat16), y.astype(jnp.bfloat16),
      w1b, b1_2d, w2_row, b2_2d)


def tripletnet_forward(x, y, z, params):
    """Deterministic (rand_cat=False) Tripletnet forward."""
    w1, b1, w2, b2 = params
    B = x.shape[0]
    if z is None:
        out = _single_apply(x, y, w1, b1, w2, b2)     # (1, B)
        return out[0].reshape(B, 1)
    # TODO(synk): args.rand_cat=True uses host-side random.randint to pick the
    # concat order; only the deterministic (rand_cat=False) branch is here.
    out = _pair_apply(x, y, z, w1, b1, w2, b2)        # (2, B)
    dist_a = out[0].reshape(B, 1)
    dist_b = out[1].reshape(B, 1)
    return dist_a, dist_b, x, y, z


def init_params(key, dim_embed, hidden):
    k1, k2, k3, k4 = jax.random.split(key, 4)
    w1 = jax.random.normal(k1, (2 * dim_embed, hidden), jnp.float32) * (
        1.0 / jnp.sqrt(2.0 * dim_embed))
    b1 = jax.random.normal(k2, (hidden,), jnp.float32) * 0.01
    w2 = jax.random.normal(k3, (hidden, 1), jnp.float32) * (1.0 / jnp.sqrt(hidden))
    b2 = jax.random.normal(k4, (1,), jnp.float32) * 0.01
    return w1, b1, w2, b2


if __name__ == "__main__":
    D = 32          # dim_embed
    H = 32          # hidden width of the metric net

    key = jax.random.PRNGKey(0)
    params = init_params(jax.random.fold_in(key, 7), D, H)
    w1, b1, w2, b2 = params

    def ref_net_bf16(a, b):
        # Mirrors the kernel numerics: bf16 MXU operands, f32 accumulation,
        # f32 bias/ReLU and f32 VPU layer-2.
        cat = jnp.concatenate([a, b], axis=1).astype(jnp.bfloat16)
        h = jnp.maximum(
            jnp.dot(cat, w1.astype(jnp.bfloat16),
                    preferred_element_type=jnp.float32) + b1, 0.0)
        return jnp.sum(h * w2.reshape(1, -1), axis=-1, keepdims=True) + b2

    def ref_net_f32(a, b):
        h = jnp.maximum(jnp.concatenate([a, b], axis=1) @ w1 + b1, 0.0)
        return h @ w2 + b2

    fwd = jax.jit(lambda x, y, z: tripletnet_forward(x, y, z, params))
    fwd1 = jax.jit(lambda x, y: tripletnet_forward(x, y, None, params))

    # B=16: small single-tile case.  B=256: exercises the multi-step batch
    # grid (TB=128, grid=(2,)) with VMEM-resident weights.
    for B in (16, 256):
        kx, ky, kz = jax.random.split(jax.random.fold_in(key, B), 3)
        x = jax.random.normal(kx, (B, D), jnp.float32)
        y = jax.random.normal(ky, (B, D), jnp.float32)
        z = jax.random.normal(kz, (B, D), jnp.float32)

        dist_a, dist_b, ex, ey, ez = fwd(x, y, z)
        jax.block_until_ready((dist_a, dist_b, ex, ey, ez))

        assert dist_a.shape == (B, 1) and dist_b.shape == (B, 1)
        ra = ref_net_bf16(x, y)
        rb = ref_net_bf16(x, z)
        assert jnp.allclose(dist_a, ra, atol=2e-3, rtol=2e-3)
        assert jnp.allclose(dist_b, rb, atol=2e-3, rtol=2e-3)
        # Loose f32 semantic sanity check (bf16 input rounding dominates).
        assert jnp.allclose(dist_a, ref_net_f32(x, y), atol=1e-1, rtol=1e-1)
        assert jnp.allclose(dist_b, ref_net_f32(x, z), atol=1e-1, rtol=1e-1)
        assert jnp.array_equal(ex, x) and jnp.array_equal(ey, y) \
            and jnp.array_equal(ez, z)

        # z=None path (single-branch kernel).
        da_only = fwd1(x, y)
        jax.block_until_ready(da_only)
        assert da_only.shape == (B, 1)
        assert jnp.allclose(da_only, ra, atol=2e-3, rtol=2e-3)

    print("KERNEL_OK")
</pallas_src>

<mosaic_0001>
module attributes {stable_mosaic.version = 11 : i64} {
  func.func @_pair_kernel(%arg0: i32, %arg1: memref<16x32xbf16, #tpu.memory_space<vmem>>, %arg2: memref<16x32xbf16, #tpu.memory_space<vmem>>, %arg3: memref<16x32xbf16, #tpu.memory_space<vmem>>, %arg4: memref<64x32xbf16, #tpu.memory_space<vmem>>, %arg5: memref<1x32xf32, #tpu.memory_space<vmem>>, %arg6: memref<1x32xf32, #tpu.memory_space<vmem>>, %arg7: memref<1x1xf32, #tpu.memory_space<smem>>, %arg8: memref<2x16xf32, #tpu.memory_space<vmem>>) attributes {dimension_semantics = [#tpu.dimension_semantics<parallel>], iteration_bounds = array<i64: 1>, scalar_prefetch = 0 : i64, scratch_operands = 0 : i64, tpu.core_type = #tpu.core_type<tc>, window_params = [{transform_indices = @transform_0, window_bounds = array<i64: 16, 32>}, {transform_indices = @transform_1, window_bounds = array<i64: 16, 32>}, {transform_indices = @transform_2, window_bounds = array<i64: 16, 32>}, {pipeline_mode = #tpu.pipeline_mode<synchronous>, transform_indices = @transform_3, window_bounds = array<i64: 64, 32>}, {pipeline_mode = #tpu.pipeline_mode<synchronous>, transform_indices = @transform_4, window_bounds = array<i64: 1, 32>}, {pipeline_mode = #tpu.pipeline_mode<synchronous>, transform_indices = @transform_5, window_bounds = array<i64: 1, 32>}, {transform_indices = @transform_6, window_bounds = array<i64: 1, 1>}, {transform_indices = @transform_7, window_bounds = array<i64: 2, 16>}]} {
    %c0 = arith.constant 0 : index
    %c0_0 = arith.constant 0 : index
    %0 = vector.load %arg4[%c0, %c0_0] : memref<64x32xbf16, #tpu.memory_space<vmem>>, vector<32x32xbf16>
    %c32 = arith.constant 32 : index
    %c0_1 = arith.constant 0 : index
    %1 = vector.load %arg4[%c32, %c0_1] : memref<64x32xbf16, #tpu.memory_space<vmem>>, vector<32x32xbf16>
    %c0_2 = arith.constant 0 : index
    %c0_3 = arith.constant 0 : index
    %2 = vector.load %arg1[%c0_2, %c0_3] : memref<16x32xbf16, #tpu.memory_space<vmem>>, vector<16x32xbf16>
    %cst = arith.constant dense<0.000000e+00> : vector<16x32xf32>
    %3 = tpu.matmul %2, %0, %cst {dimension_numbers = #tpu.dot_dimension_numbers<[1], [0], [0], [1], [0, 0, 1, 1], [], []>} : vector<16x32xbf16>, vector<32x32xbf16>, vector<16x32xf32> -> vector<16x32xf32>
    %c0_4 = arith.constant 0 : index
    %c0_5 = arith.constant 0 : index
    %4 = vector.load %arg2[%c0_4, %c0_5] : memref<16x32xbf16, #tpu.memory_space<vmem>>, vector<16x32xbf16>
    %c0_6 = arith.constant 0 : index
    %c0_7 = arith.constant 0 : index
    %5 = vector.load %arg3[%c0_6, %c0_7] : memref<16x32xbf16, #tpu.memory_space<vmem>>, vector<16x32xbf16>
    %6 = tpu.concatenate %4, %5 in 0 : vector<16x32xbf16>, vector<16x32xbf16> -> vector<32x32xbf16>
    %cst_8 = arith.constant dense<0.000000e+00> : vector<32x32xf32>
    %7 = tpu.matmul %6, %1, %cst_8 {dimension_numbers = #tpu.dot_dimension_numbers<[1], [0], [0], [1], [0, 0, 1, 1], [], []>} : vector<32x32xbf16>, vector<32x32xbf16>, vector<32x32xf32> -> vector<32x32xf32>
    %c0_9 = arith.constant 0 : index
    %c0_10 = arith.constant 0 : index
    %8 = vector.load %arg5[%c0_9, %c0_10] : memref<1x32xf32, #tpu.memory_space<vmem>>, vector<1x32xf32>
    %9 = vector.shape_cast %7 : vector<32x32xf32> to vector<2x16x32xf32>
    %10 = vector.shape_cast %3 : vector<16x32xf32> to vector<1x16x32xf32>
    %11 = vector.broadcast %10 : vector<1x16x32xf32> to vector<2x16x32xf32>
    %12 = arith.addf %9, %11 : vector<2x16x32xf32>
    %13 = vector.shape_cast %8 : vector<1x32xf32> to vector<1x1x32xf32>
    %14 = vector.broadcast %13 : vector<1x1x32xf32> to vector<2x16x32xf32>
    %15 = arith.addf %12, %14 : vector<2x16x32xf32>
    %cst_11 = arith.constant 0.000000e+00 : f32
    %16 = vector.broadcast %cst_11 : f32 to vector<2x16x32xf32>
    %17 = arith.maximumf %15, %16 : vector<2x16x32xf32>
    %c0_12 = arith.constant 0 : index
    %c0_13 = arith.constant 0 : index
    %18 = vector.load %arg6[%c0_12, %c0_13] : memref<1x32xf32, #tpu.memory_space<vmem>>, vector<1x32xf32>
    %c0_14 = arith.constant 0 : index
    %c0_15 = arith.constant 0 : index
    %19 = memref.load %arg7[%c0_14, %c0_15] : memref<1x1xf32, #tpu.memory_space<smem>>
    %20 = vector.shape_cast %18 : vector<1x32xf32> to vector<1x1x32xf32>
    %21 = vector.broadcast %20 : vector<1x1x32xf32> to vector<2x16x32xf32>
    %22 = arith.mulf %17, %21 : vector<2x16x32xf32>
    %cst_16 = arith.constant dense<0.000000e+00> : vector<2x16xf32>
    %23 = vector.multi_reduction <add>, %22, %cst_16 [2] : vector<2x16x32xf32> to vector<2x16xf32>
    %24 = vector.broadcast %19 : f32 to vector<2x16xf32>
    %25 = arith.addf %23, %24 : vector<2x16xf32>
    %c0_17 = arith.constant 0 : index
    %c0_18 = arith.constant 0 : index
    %26 = vector.load %arg8[%c0_17, %c0_18] : memref<2x16xf32, #tpu.memory_space<vmem>>, vector<2x16xf32>
    tpu.vector_store %arg8[%c0_17, %c0_18], %25 {strides = array<i32>} : memref<2x16xf32, #tpu.memory_space<vmem>>, vector<2x16xf32>,
    return
  }
  func.func @transform_0(%arg0: i32) -> (i32, i32) {
    %c0_i32 = arith.constant 0 : i32
    %c0_i32_0 = arith.constant 0 : i32
    return %arg0, %c0_i32 : i32, i32
  }
  func.func @transform_1(%arg0: i32) -> (i32, i32) {
    %c0_i32 = arith.constant 0 : i32
    %c0_i32_0 = arith.constant 0 : i32
    return %arg0, %c0_i32 : i32, i32
  }
  func.func @transform_2(%arg0: i32) -> (i32, i32) {
    %c0_i32 = arith.constant 0 : i32
    %c0_i32_0 = arith.constant 0 : i32
    return %arg0, %c0_i32 : i32, i32
  }
  func.func @transform_3(%arg0: i32) -> (i32, i32) {
    %c0_i32 = arith.constant 0 : i32
    %c0_i32_0 = arith.constant 0 : i32
    %c0_i32_1 = arith.constant 0 : i32
    return %c0_i32, %c0_i32_0 : i32, i32
  }
  func.func @transform_4(%arg0: i32) -> (i32, i32) {
    %c0_i32 = arith.constant 0 : i32
    %c0_i32_0 = arith.constant 0 : i32
    %c0_i32_1 = arith.constant 0 : i32
    return %c0_i32, %c0_i32_0 : i32, i32
  }
  func.func @transform_5(%arg0: i32) -> (i32, i32) {
    %c0_i32 = arith.constant 0 : i32
    %c0_i32_0 = arith.constant 0 : i32
    %c0_i32_1 = arith.constant 0 : i32
    return %c0_i32, %c0_i32_0 : i32, i32
  }
  func.func @transform_6(%arg0: i32) -> (i32, i32) {
    %c0_i32 = arith.constant 0 : i32
    %c0_i32_0 = arith.constant 0 : i32
    %c0_i32_1 = arith.constant 0 : i32
    return %c0_i32, %c0_i32_0 : i32, i32
  }
  func.func @transform_7(%arg0: i32) -> (i32, i32) {
    %c0_i32 = arith.constant 0 : i32
    %c0_i32_0 = arith.constant 0 : i32
    return %c0_i32, %arg0 : i32, i32
  }
}

</mosaic_0001>

<llo_original>
// kernel: _lambda_.1
$region0: #{_lambda_.1}
  #allocation0 [shape = 'u32[]', space=smem, size = 0x4, offset = 0x4, fixed_abs, tag = 'smem constant byte address 0x4 - core index']
  #allocation1 [shape = 'u32[144,128]{1,0:T(1,128)}', space=vmem, size = 0x12000, scoped, tag = 'internal scratch']
  #allocation2 [shape = 'f32[1,1]{1,0:T(1,128)S(6)}', space=smem, size = 0x200, scoped, tag = 'scoped memory for _lambda_.1']
  %s0 = inlined_call_operand.vmem [shape: bf16[16,32], index: 0, kind: input, shape index: {}]
  %s1 = inlined_call_operand.vmem [shape: bf16[16,32], index: 1, kind: input, shape index: {}]
  %s2 = inlined_call_operand.vmem [shape: bf16[16,32], index: 2, kind: input, shape index: {}]
  %s3 = inlined_call_operand.vmem [shape: bf16[64,32], index: 3, kind: input, shape index: {}]
  %s4 = inlined_call_operand.vmem [shape: f32[1,32], index: 4, kind: input, shape index: {}]
  %s5 = inlined_call_operand.vmem [shape: f32[1,32], index: 5, kind: input, shape index: {}]
  %s6 = inlined_call_operand.<no memory space> [shape: f32[1,1], index: 6, kind: input, shape index: {}]
  %s7 = inlined_call_operand.vmem [shape: f32[2,16], index: 7, kind: output, shape index: {}]
  %s8 = sld [smem:[#allocation0]]
  $region38: #{_lambda_.1} parent=0
    _
  %s10 = ssub.s32 1, %s8
  %s11 = scalar_select 0, %s10, %s8
  %12 = sst [smem:[#allocation2]] %s6
  // Predicated region
  $region2: #{_lambda_.1} parent=0 // pred_check
    _
  $region3: #{_lambda_.1} parent=0 // pred_check_branch
    %14 = sbr.rel (0) target = $region5
  $region4: #{_lambda_.1} parent=0 // pred_region
    _
  $region5: #{_lambda_.1} parent=0 // pred_fallthru
    _
  // Predicated region
  $region6: #{_lambda_.1} parent=0 // pred_check
    _
  $region7: #{_lambda_.1} parent=0 // pred_check_branch
    %16 = sbr.rel (0) target = $region9
  $region8: #{_lambda_.1} parent=0 // pred_region
    _
  $region9: #{_lambda_.1} parent=0 // pred_fallthru
    _
  // Predicated region
  $region10: #{_lambda_.1} parent=0 // pred_check
    _
  $region11: #{_lambda_.1} parent=0 // pred_check_branch
    %18 = sbr.rel (0) target = $region13
  $region12: #{_lambda_.1} parent=0 // pred_region
    _
  $region13: #{_lambda_.1} parent=0 // pred_fallthru
    _
  // Predicated region
  $region14: #{_lambda_.1} parent=0 // pred_check
    _
  $region15: #{_lambda_.1} parent=0 // pred_check_branch
    %20 = sbr.rel (0) target = $region17
  $region16: #{_lambda_.1} parent=0 // pred_region
    _
  $region17: #{_lambda_.1} parent=0 // pred_fallthru
    _
  // Predicated region
  $region18: #{_lambda_.1} parent=0 // pred_check
    _
  $region19: #{_lambda_.1} parent=0 // pred_check_branch
    %22 = sbr.rel (0) target = $region21
  $region20: #{_lambda_.1} parent=0 // pred_region
    _
  $region21: #{_lambda_.1} parent=0 // pred_fallthru
    _
  // Predicated region
  $region22: #{_lambda_.1} parent=0 // pred_check
    _
  $region23: #{_lambda_.1} parent=0 // pred_check_branch
    %24 = sbr.rel (0) target = $region25
  $region24: #{_lambda_.1} parent=0 // pred_region
    _
  $region25: #{_lambda_.1} parent=0 // pred_fallthru
    _
  // Predicated region
  $region26: #{_lambda_.1} parent=0 // pred_check
    _
  $region27: #{_lambda_.1} parent=0 // pred_check_branch
    %26 = sbr.rel (0) target = $region29
  $region28: #{_lambda_.1} parent=0 // pred_region
    _
  $region29: #{_lambda_.1} parent=0 // pred_fallthru
    _
  %v28 = vld [vmem:[%s3] sm:$0xf]
  %v29 = vld [vmem:[%s3 + $0x4] sm:$0xf]
  %v30 = vld [vmem:[%s3 + $0x8] sm:$0xf]
  %v31 = vld [vmem:[%s3 + $0xc] sm:$0xf]
  %v32 = vld [vmem:[%s3 + $0x10] sm:$0xf]
  %v33 = vld [vmem:[%s3 + $0x14] sm:$0xf]
  %v34 = vld [vmem:[%s3 + $0x18] sm:$0xf]
  %v35 = vld [vmem:[%s3 + $0x1c] sm:$0xf]
  %v36 = vld [vmem:[%s0] sm:$0xf]
  %v37 = vld [vmem:[%s0 + $0x4] sm:$0xf]
  %v40 = vunpack.c.l.b16 %v36
  %v41 = vunpack.c.l.b16 %v37
  %v42 = vpack.c.b16 %v41, %v40
  %v47 = vunpack.c.l.b16 %v28
  %v48 = vunpack.c.l.b16 %v29
  %v49 = vunpack.c.l.b16 %v30
  %v50 = vunpack.c.l.b16 %v31
  %v51 = vpack.c.b16 %v48, %v47
  %v52 = vpack.c.b16 %v50, %v49
  %vm55 = vcmask 261120
  %v57 = vsel %vm55, %v42, 0
  %59 = vmatprep.subr.bf16.mxu0 0
  %60 = vmatpush1.bf16.msra.mxu0 %v51
  %61 = vmatprep.subr.bf16.mxu0 0
  %62 = vmatpush1.bf16.msra.mxu0 %v52
  %63 = vmatprep.subr.bf16.mxu0 0
  %64 = vmatpush1.bf16.msra.mxu0 0
  %65 = vmatprep.subr.bf16.mxu0 0
  %66 = vmatpush1.bf16.msra.mxu0 0
  %67 = vmatprep.subr.bf16.mxu0 0
  %68 = vmatpush1.bf16.msra.mxu0 0
  %69 = vmatprep.subr.bf16.mxu0 0
  %70 = vmatpush1.bf16.msra.mxu0 0
  %71 = vmatprep.subr.bf16.mxu0 0
  %72 = vmatpush1.bf16.msra.mxu0 0
  %73 = vmatprep.subr.bf16.mxu0 0
  %74 = vmatpush1.bf16.msra.mxu0 0
  %75 = vmatprep.subr.bf16.mxu0 0
  %76 = vmatpush1.bf16.msra.mxu0 0
  %77 = vmatprep.subr.bf16.mxu0 0
  %78 = vmatpush1.bf16.msra.mxu0 0
  %79 = vmatprep.subr.bf16.mxu0 0
  %80 = vmatpush1.bf16.msra.mxu0 0
  %81 = vmatprep.subr.bf16.mxu0 0
  %82 = vmatpush1.bf16.msra.mxu0 0
  %83 = vmatprep.subr.bf16.mxu0 0
  %84 = vmatpush1.bf16.msra.mxu0 0
  %85 = vmatprep.subr.bf16.mxu0 0
  %86 = vmatpush1.bf16.msra.mxu0 0
  %87 = vmatprep.subr.bf16.mxu0 0
  %88 = vmatpush1.bf16.msra.mxu0 0
  %89 = vmatprep.subr.bf16.mxu0 0
  %90 = vmatpush1.bf16.msra.mxu0 0
  %91 = vmatprep.mubr.bf16.mxu0 0
  %92 = vmatmul.mubr.bf16.gmra.mrb[0].mxu0 %v57
  %v93 = vpop.f32.mrb[0].mxu0
  %v94 = vadd.f32 0.0, %v93
  %v95 = vpop.f32.mrb[0].mxu0
  %v96 = vpop.f32.mrb[0].mxu0
  %v97 = vadd.f32 0.0, %v96
  %v98 = vpop.f32.mrb[0].mxu0
  %99 = vdwg.mxu0
  %v100 = vld [vmem:[%s1] sm:$0xf]
  %v101 = vld [vmem:[%s1 + $0x4] sm:$0xf]
  %v102 = vld [vmem:[%s2] sm:$0xf]
  %v103 = vld [vmem:[%s2 + $0x4] sm:$0xf]
  %v106 = vunpack.c.l.b16 %v100
  %v107 = vunpack.c.l.b16 %v101
  %v108 = vpack.c.b16 %v107, %v106
  %v111 = vunpack.c.l.b16 %v102
  %v112 = vunpack.c.l.b16 %v103
  %v113 = vpack.c.b16 %v112, %v111
  %v118 = vunpack.c.l.b16 %v32
  %v119 = vunpack.c.l.b16 %v33
  %v120 = vunpack.c.l.b16 %v34
  %v121 = vunpack.c.l.b16 %v35
  %v122 = vpack.c.b16 %v119, %v118
  %v123 = vpack.c.b16 %v121, %v120
  %v127 = vsel %vm55, %v108, 0
  %v130 = vsel %vm55, %v113, 0
  %132 = vmatprep.subr.bf16.mxu0 0
  %133 = vmatpush1.bf16.msra.mxu0 %v122
  %134 = vmatprep.subr.bf16.mxu0 0
  %135 = vmatpush1.bf16.msra.mxu0 %v123
  %136 = vmatprep.subr.bf16.mxu0 0
  %137 = vmatpush1.bf16.msra.mxu0 0
  %138 = vmatprep.subr.bf16.mxu0 0
  %139 = vmatpush1.bf16.msra.mxu0 0
  %140 = vmatprep.subr.bf16.mxu0 0
  %141 = vmatpush1.bf16.msra.mxu0 0
  %142 = vmatprep.subr.bf16.mxu0 0
  %143 = vmatpush1.bf16.msra.mxu0 0
  %144 = vmatprep.subr.bf16.mxu0 0
  %145 = vmatpush1.bf16.msra.mxu0 0
  %146 = vmatprep.subr.bf16.mxu0 0
  %147 = vmatpush1.bf16.msra.mxu0 0
  %148 = vmatprep.subr.bf16.mxu0 0
  %149 = vmatpush1.bf16.msra.mxu0 0
  %150 = vmatprep.subr.bf16.mxu0 0
  %151 = vmatpush1.bf16.msra.mxu0 0
  %152 = vmatprep.subr.bf16.mxu0 0
  %153 = vmatpush1.bf16.msra.mxu0 0
  %154 = vmatprep.subr.bf16.mxu0 0
  %155 = vmatpush1.bf16.msra.mxu0 0
  %156 = vmatprep.subr.bf16.mxu0 0
  %157 = vmatpush1.bf16.msra.mxu0 0
  %158 = vmatprep.subr.bf16.mxu0 0
  %159 = vmatpush1.bf16.msra.mxu0 0
  %160 = vmatprep.subr.bf16.mxu0 0
  %161 = vmatpush1.bf16.msra.mxu0 0
  %162 = vmatprep.subr.bf16.mxu0 0
  %163 = vmatpush1.bf16.msra.mxu0 0
  %164 = vmatprep.mubr.bf16.mxu0 0
  %165 = vmatmul.mubr.bf16.gmra.mrb[0].mxu0 %v127
  %v166 = vpop.f32.mrb[0].mxu0
  %v167 = vadd.f32 0.0, %v166
  %v168 = vpop.f32.mrb[0].mxu0
  %v169 = vpop.f32.mrb[0].mxu0
  %v170 = vadd.f32 0.0, %v169
  %v171 = vpop.f32.mrb[0].mxu0
  %172 = vmatprep.mubr.bf16.mxu0 0
  %173 = vmatmul.mubr.bf16.gmra.mrb[0].mxu0 %v130
  %v174 = vpop.f32.mrb[0].mxu0
  %v175 = vadd.f32 0.0, %v174
  %v176 = vpop.f32.mrb[0].mxu0
  %v177 = vpop.f32.mrb[0].mxu0
  %v178 = vadd.f32 0.0, %v177
  %v179 = vpop.f32.mrb[0].mxu0
  %180 = vdwg.mxu0
  %v181 = vld [vmem:[%s4] sm:$0x1]
  %v182 = vadd.f32 %v167, %v94
  %v183 = vadd.f32 %v170, %v97
  %v184 = vadd.f32 %v175, %v94
  %v185 = vadd.f32 %v178, %v97
  %v187 = vlaneseq
  %v188 = vshrl.u32 %v187, 7
  %v189 = vsub.s32 0, %v188
  %v190 = vrot.slane %v181, %v189
  %v192 = vadd.f32 %v182, %v190
  %v193 = vadd.f32 %v183, %v190
  %v194 = vadd.f32 %v184, %v190
  %v195 = vadd.f32 %v185, %v190
  %v196 = vmax.f32 %v192, 0.0
  %v197 = vmax.f32 %v193, 0.0
  %v198 = vmax.f32 %v194, 0.0
  %v199 = vmax.f32 %v195, 0.0
  %v200 = vld [vmem:[%s5] sm:$0x1]
  %s201 = sld [smem:[#allocation2]]
  %v203 = vlaneseq
  %v204 = vshrl.u32 %v203, 7
  %v205 = vsub.s32 0, %v204
  %v206 = vrot.slane %v200, %v205
  %v208 = vmul.f32 %v196, %v206
  %v209 = vmul.f32 %v197, %v206
  %v210 = vmul.f32 %v198, %v206
  %v211 = vmul.f32 %v199, %v206
  %v212 = vsel %vm55, %v208, 0.0
  %213 = vadd.xlane.f32.xlu0 %v212
  %v214 = vpop.xlane.xlu0 %213
  %v215 = vsel %vm55, %v209, 0.0
  %216 = vadd.xlane.f32.xlu0 %v215
  %v217 = vpop.xlane.xlu0 %216
  %v218 = vsel %vm55, %v210, 0.0
  %219 = vadd.xlane.f32.xlu0 %v218
  %v220 = vpop.xlane.xlu0 %219
  %v221 = vsel %vm55, %v211, 0.0
  %222 = vadd.xlane.f32.xlu0 %v221
  %v223 = vpop.xlane.xlu0 %222
  %v224 = vstv %s201
  %v225 = vadd.f32 %v214, %v224
  %v226 = vadd.f32 %v217, %v224
  %v227 = vadd.f32 %v220, %v224
  %v228 = vadd.f32 %v223, %v224
  %v233 = vlaneseq
  %v234 = vand.u32 %v233, 127
  %v235 = vlaneseq
  %v236 = vshrl.u32 %v235, 7
  %v237 = vsub.s32 %v234, %v236
  %v238 = vrot.slane %v225, %v237
  %v239 = vadd.s32 %v234, 4294967288
  %v240 = vlaneseq
  %v241 = vshrl.u32 %v240, 7
  %v242 = vsub.s32 %v239, %v241
  %v243 = vrot.slane %v226, %v242
  %vm244 = vcmask 130112
  %v245 = vsel %vm244, %v243, %v238
  %v246 = vlaneseq
  %v247 = vshrl.u32 %v246, 7
  %v248 = vsub.s32 %v234, %v247
  %v249 = vrot.slane %v227, %v248
  %v250 = vlaneseq
  %v251 = vshrl.u32 %v250, 7
  %v252 = vsub.s32 %v239, %v251
  %v253 = vrot.slane %v228, %v252
  %v254 = vsel %vm244, %v253, %v249
  %vm255 = vcmask 1041409
  %v256 = vsel %vm255, %v254, %v245
  %vm258 = vcmask 123904
  %259 = vst.msk [vmem:[%s7] sm:$0x3] %vm258, %v256
  // Predicated region
  $region30: #{_lambda_.1} parent=0 // pred_check
    _
  $region31: #{_lambda_.1} parent=0 // pred_check_branch
    %261 = sbr.rel (0) target = $region33
  $region32: #{_lambda_.1} parent=0 // pred_region
    _
  $region33: #{_lambda_.1} parent=0 // pred_fallthru
    _
  // Predicated region
  $region34: #{_lambda_.1} parent=0 // pred_check
    _
  $region35: #{_lambda_.1} parent=0 // pred_check_branch
    %263 = sbr.rel (0) target = $region37
  $region36: #{_lambda_.1} parent=0 // pred_region
    _
  $region37: #{_lambda_.1} parent=0 // pred_fallthru
    _

</llo_original>
